<compile_context>
chip_gen: v7x
topology: tpu7x:2x2x1
jax: 0.10.0
libtpu: 0.0.40
codegen_flags: <defaults>
</compile_context>

<pallas_src>
import math

import jax
import jax.numpy as jnp
from jax.experimental import pallas as pl
from jax.experimental.pallas import tpu as pltpu

# ---- CG hyperparameters (module __init__ defaults) ----
DIMENSION = 2
WIN = 1
NUM_BINS = 16
KERNEL_SIGMA = 1.0
EPS = 1e-8
MULTIPLIER = 1.0
BK_THRESHOLD = float("-inf")
RADIUS = math.ceil(2 * KERNEL_SIGMA)          # 2
TOTAL_BINS = NUM_BINS + 2 * RADIUS            # 20
# (CG has no learnable parameters; nothing to initialise.)


def _bspline(d):
    """Generic cubic B-spline kernel (used only by the pure-JAX reference)."""
    a = jnp.abs(d / KERNEL_SIGMA)
    inner = (3.0 * a ** 3 - 6.0 * a ** 2 + 4.0) / 6.0
    outer = (2.0 - a) ** 3 / 6.0
    return jnp.where(a < 1.0, inner, jnp.where(a < 2.0, outer, jnp.zeros_like(a)))


def cg_kernel(x_ref, o_ref):
    x = x_ref[0]                                          # (N, T) f32
    max_v = jnp.max(x, axis=0, keepdims=True)             # (1, T)
    min_v = jnp.min(x, axis=0, keepdims=True)
    bin_width = (max_v - min_v) / NUM_BINS
    pad_min_v = min_v - bin_width * RADIUS
    bw = jnp.maximum(bin_width, EPS)

    # Single per-element divide; floor/clip reused for both bin_idx and img_idx
    # so bin assignment is bit-identical to the reference.
    bin_pos = (x - pad_min_v) / bw                        # (N, T)
    fpos = jnp.floor(bin_pos)
    bin_idx = jnp.clip(fpos, float(RADIUS), float(RADIUS + NUM_BINS - 1))
    img_idx = jnp.clip(fpos, 0.0, float(TOTAL_BINS - 1))
    frac = bin_pos - bin_idx                              # in [0, 1]

    # Branch-specialised B-spline taps; tap r is evaluated at d = frac + 1 - r:
    #   r=0: d in [1,2]  -> (2-d)^3/6 = (1-frac)^3/6
    #   r=1: d in [0,1]  -> inner cubic of frac
    #   r=2: d in [-1,0] -> inner cubic of (1-frac)
    #   r=3: d in [-2,-1]-> (2-|d|)^3/6 = frac^3/6
    u = frac
    v = 1.0 - frac
    u2 = u * u
    u3 = u2 * u
    v2 = v * v
    v3 = v2 * v
    w0 = v3 * (1.0 / 6.0)
    w1 = 0.5 * u3 - u2 + (2.0 / 3.0)
    w2 = 0.5 * v3 - v2 + (2.0 / 3.0)
    w3 = u3 * (1.0 / 6.0)
    taps = (w0, w1, w2, w3)

    # Total histogram mass == sum of all tap weights (no 20-row hist needed).
    denom = jnp.sum(w0 + w1 + w2 + w3, axis=0, keepdims=True)       # (1, T)
    inv_denom = 1.0 / jnp.maximum(denom, EPS)

    # One-hot masks on bin_idx, shared across the 4 taps (16 compares total).
    onehot = {j: bin_idx == float(j) for j in range(RADIUS, RADIUS + NUM_BINS)}

    # Fused scatter (per-bin histogram) + gather (each image reads its bin).
    # Bin k receives tap r from elements whose bin_idx == k + (RADIUS-1) - r.
    # Bin 0 never receives mass, and bins {0, TOTAL_BINS-1} can never be
    # gathered (img_idx <= TOTAL_BINS-2), so both endpoints are skipped.
    gathered = jnp.zeros_like(x)
    for k in range(1, TOTAL_BINS - 1):
        acc = None
        for r in range(2 * RADIUS):
            j = k + (RADIUS - 1) - r
            if RADIUS <= j <= RADIUS + NUM_BINS - 1:
                term = jnp.where(onehot[j], taps[r], 0.0)
                acc = term if acc is None else acc + term
        hist_k = jnp.sum(acc, axis=0, keepdims=True)                # (1, T)
        gathered = gathered + jnp.where(img_idx == float(k), hist_k, 0.0)

    out = gathered * inv_denom
    # Default config (multiplier=1, bk_threshold=-inf) skips the mask work.
    if MULTIPLIER != 1.0 or BK_THRESHOLD != float("-inf"):
        out = out * (x > BK_THRESHOLD).astype(x.dtype) * MULTIPLIER
    o_ref[0] = out.astype(o_ref.dtype)


def _choose_tile_p(batch_blocks, P, max_tile=2048, min_grid_blocks=4):
    """Largest lane tile (multiple of 128, divisor of P, <= max_tile) that still
    leaves >= min_grid_blocks total grid steps (keeps both v7x cores fed)."""
    if P % 128 != 0:
        return P                                   # single full-row block
    cands = [t for t in range(128, min(P, max_tile) + 1, 128) if P % t == 0]
    if not cands:
        return P
    best = None
    for t in cands:                                # ascending
        if batch_blocks * (P // t) >= min_grid_blocks:
            best = t                               # biggest tile w/ enough blocks
    return best if best is not None else cands[-1]


def cg_forward(images, tile_p=None):
    """images: (B, N, 1, H, W) float -> (B, N, H, W).  (win=1, mask=None path.)"""
    B, N, one, H, W = images.shape
    assert one == 1
    P = H * W
    x = images.reshape(B, N, P).astype(jnp.float32)

    if tile_p is None:
        tile_p = _choose_tile_p(B, P)
    assert P % tile_p == 0

    # Per-block VMEM (in + out, double-buffered) = 4 * N * tile_p * 4 B — tiny
    # on all generations, so the default scoped-VMEM limit is plenty.
    out = pl.pallas_call(
        cg_kernel,
        out_shape=jax.ShapeDtypeStruct((B, N, P), jnp.float32),
        grid_spec=pltpu.PrefetchScalarGridSpec(
            num_scalar_prefetch=0,
            grid=(B, P // tile_p),
            in_specs=[pl.BlockSpec((1, N, tile_p), lambda b, p: (b, 0, p))],
            out_specs=pl.BlockSpec((1, N, tile_p), lambda b, p: (b, 0, p)),
        ),
        compiler_params=pltpu.CompilerParams(
            dimension_semantics=("parallel", "parallel")),
    )(x)
    return out.reshape(B, N, H, W).astype(images.dtype)


def cg_reference(images):
    """Pure-JAX mirror of the PyTorch forward (win=1, mask=None)."""
    B, N, _, H, W = images.shape
    x = images.reshape(B, N, H * W).astype(jnp.float32)
    max_v = x.max(axis=1, keepdims=True)
    min_v = x.min(axis=1, keepdims=True)
    bin_width = (max_v - min_v) / NUM_BINS
    pad_min_v = min_v - bin_width * RADIUS
    bw = jnp.maximum(bin_width, EPS)
    bin_pos = (x - pad_min_v) / bw
    bin_idx = jnp.clip(jnp.floor(bin_pos), RADIUS, RADIUS + NUM_BINS - 1)
    min_win_idx = bin_idx - (RADIUS - 1)
    win_idx = jnp.stack([min_win_idx + r for r in range(2 * RADIUS)])     # (2R,B,N,P)
    win_w = _bspline(bin_pos[None] - win_idx)
    bin_weight = jnp.stack(
        [jnp.sum((win_idx == float(k)) * win_w, axis=0) for k in range(TOTAL_BINS)])
    hist = bin_weight.sum(axis=2)                                         # (TB,B,P)
    density = hist / jnp.maximum(hist.sum(axis=0, keepdims=True), EPS)
    img_idx = jnp.clip(jnp.floor((x - pad_min_v) / bw), 0,
                       TOTAL_BINS - 1).astype(jnp.int32)
    dens_b = jnp.transpose(density, (1, 0, 2))                            # (B,TB,P)
    out = jnp.take_along_axis(dens_b, img_idx, axis=1)                    # (B,N,P)
    mask = (x > BK_THRESHOLD).astype(x.dtype)
    return (out * mask * MULTIPLIER).reshape(B, N, H, W)


if __name__ == "__main__":
    key = jax.random.PRNGKey(0)
    B, N, H, W = 2, 4, 16, 16
    images = jax.random.normal(key, (B, N, 1, H, W), dtype=jnp.float32)

    out = cg_forward(images)
    jax.block_until_ready(out)

    ref = cg_reference(images)
    max_err = float(jnp.max(jnp.abs(out - ref)))
    assert jnp.allclose(out, ref, atol=1e-5, rtol=1e-5), f"max_err={max_err}"
    print("KERNEL_OK")
</pallas_src>

<mosaic_0001>
module attributes {stable_mosaic.version = 11 : i64} {
  func.func @cg_kernel(%arg0: i32, %arg1: i32, %arg2: memref<1x4x128xf32, #tpu.memory_space<vmem>>, %arg3: memref<1x4x128xf32, #tpu.memory_space<vmem>>) attributes {dimension_semantics = [#tpu.dimension_semantics<parallel>, #tpu.dimension_semantics<parallel>], iteration_bounds = array<i64: 2, 2>, scalar_prefetch = 0 : i64, scratch_operands = 0 : i64, tpu.core_type = #tpu.core_type<tc>, window_params = [{transform_indices = @transform_0, window_bounds = array<i64: 1, 4, 128>}, {transform_indices = @transform_1, window_bounds = array<i64: 1, 4, 128>}]} {
    %c0 = arith.constant 0 : index
    %c0_0 = arith.constant 0 : index
    %c0_1 = arith.constant 0 : index
    %0 = vector.load %arg2[%c0, %c0_0, %c0_1] : memref<1x4x128xf32, #tpu.memory_space<vmem>>, vector<1x4x128xf32>
    %1 = vector.shape_cast %0 : vector<1x4x128xf32> to vector<4x128xf32>
    %cst = arith.constant dense<0xFF800000> : vector<128xf32>
    %2 = vector.multi_reduction <maximumf>, %1, %cst [0] : vector<4x128xf32> to vector<128xf32>
    %3 = vector.shape_cast %2 : vector<128xf32> to vector<1x128xf32>
    %cst_2 = arith.constant dense<0x7F800000> : vector<128xf32>
    %4 = vector.multi_reduction <minimumf>, %1, %cst_2 [0] : vector<4x128xf32> to vector<128xf32>
    %5 = vector.shape_cast %4 : vector<128xf32> to vector<1x128xf32>
    %6 = arith.subf %3, %5 : vector<1x128xf32>
    %cst_3 = arith.constant 1.600000e+01 : f32
    %7 = vector.broadcast %cst_3 : f32 to vector<1x128xf32>
    %8 = arith.divf %6, %7 : vector<1x128xf32>
    %cst_4 = arith.constant 2.000000e+00 : f32
    %9 = vector.broadcast %cst_4 : f32 to vector<1x128xf32>
    %10 = arith.mulf %8, %9 : vector<1x128xf32>
    %11 = arith.subf %5, %10 : vector<1x128xf32>
    %cst_5 = arith.constant 9.99999993E-9 : f32
    %12 = vector.broadcast %cst_5 : f32 to vector<1x128xf32>
    %13 = arith.maximumf %8, %12 : vector<1x128xf32>
    %14 = vector.broadcast %11 : vector<1x128xf32> to vector<4x128xf32>
    %15 = arith.subf %1, %14 : vector<4x128xf32>
    %16 = vector.broadcast %13 : vector<1x128xf32> to vector<4x128xf32>
    %17 = arith.divf %15, %16 : vector<4x128xf32>
    %18 = math.floor %17 : vector<4x128xf32>
    %cst_6 = arith.constant 2.000000e+00 : f32
    %cst_7 = arith.constant 1.700000e+01 : f32
    %19 = vector.broadcast %cst_6 : f32 to vector<4x128xf32>
    %20 = arith.maximumf %19, %18 : vector<4x128xf32>
    %21 = vector.broadcast %cst_7 : f32 to vector<4x128xf32>
    %22 = arith.minimumf %21, %20 : vector<4x128xf32>
    %cst_8 = arith.constant 0.000000e+00 : f32
    %cst_9 = arith.constant 1.900000e+01 : f32
    %23 = vector.broadcast %cst_8 : f32 to vector<4x128xf32>
    %24 = arith.maximumf %23, %18 : vector<4x128xf32>
    %25 = vector.broadcast %cst_9 : f32 to vector<4x128xf32>
    %26 = arith.minimumf %25, %24 : vector<4x128xf32>
    %27 = arith.subf %17, %22 : vector<4x128xf32>
    %cst_10 = arith.constant 1.000000e+00 : f32
    %28 = vector.broadcast %cst_10 : f32 to vector<4x128xf32>
    %29 = arith.subf %28, %27 : vector<4x128xf32>
    %30 = arith.mulf %27, %27 : vector<4x128xf32>
    %31 = arith.mulf %30, %27 : vector<4x128xf32>
    %32 = arith.mulf %29, %29 : vector<4x128xf32>
    %33 = arith.mulf %32, %29 : vector<4x128xf32>
    %cst_11 = arith.constant 0.166666672 : f32
    %34 = vector.broadcast %cst_11 : f32 to vector<4x128xf32>
    %35 = arith.mulf %33, %34 : vector<4x128xf32>
    %cst_12 = arith.constant 5.000000e-01 : f32
    %36 = vector.broadcast %cst_12 : f32 to vector<4x128xf32>
    %37 = arith.mulf %36, %31 : vector<4x128xf32>
    %38 = arith.subf %37, %30 : vector<4x128xf32>
    %cst_13 = arith.constant 0.666666686 : f32
    %39 = vector.broadcast %cst_13 : f32 to vector<4x128xf32>
    %40 = arith.addf %38, %39 : vector<4x128xf32>
    %cst_14 = arith.constant 5.000000e-01 : f32
    %41 = vector.broadcast %cst_14 : f32 to vector<4x128xf32>
    %42 = arith.mulf %41, %33 : vector<4x128xf32>
    %43 = arith.subf %42, %32 : vector<4x128xf32>
    %cst_15 = arith.constant 0.666666686 : f32
    %44 = vector.broadcast %cst_15 : f32 to vector<4x128xf32>
    %45 = arith.addf %43, %44 : vector<4x128xf32>
    %cst_16 = arith.constant 0.166666672 : f32
    %46 = vector.broadcast %cst_16 : f32 to vector<4x128xf32>
    %47 = arith.mulf %31, %46 : vector<4x128xf32>
    %48 = arith.addf %35, %40 : vector<4x128xf32>
    %49 = arith.addf %48, %45 : vector<4x128xf32>
    %50 = arith.addf %49, %47 : vector<4x128xf32>
    %cst_17 = arith.constant dense<0.000000e+00> : vector<128xf32>
    %51 = vector.multi_reduction <add>, %50, %cst_17 [0] : vector<4x128xf32> to vector<128xf32>
    %52 = vector.shape_cast %51 : vector<128xf32> to vector<1x128xf32>
    %cst_18 = arith.constant 9.99999993E-9 : f32
    %53 = vector.broadcast %cst_18 : f32 to vector<1x128xf32>
    %54 = arith.maximumf %52, %53 : vector<1x128xf32>
    %cst_19 = arith.constant 1.000000e+00 : f32
    %55 = vector.broadcast %cst_19 : f32 to vector<1x128xf32>
    %56 = arith.divf %55, %54 : vector<1x128xf32>
    %cst_20 = arith.constant 2.000000e+00 : f32
    %57 = vector.broadcast %cst_20 : f32 to vector<4x128xf32>
    %58 = arith.cmpf oeq, %22, %57 : vector<4x128xf32>
    %cst_21 = arith.constant 3.000000e+00 : f32
    %59 = vector.broadcast %cst_21 : f32 to vector<4x128xf32>
    %60 = arith.cmpf oeq, %22, %59 : vector<4x128xf32>
    %cst_22 = arith.constant 4.000000e+00 : f32
    %61 = vector.broadcast %cst_22 : f32 to vector<4x128xf32>
    %62 = arith.cmpf oeq, %22, %61 : vector<4x128xf32>
    %cst_23 = arith.constant 5.000000e+00 : f32
    %63 = vector.broadcast %cst_23 : f32 to vector<4x128xf32>
    %64 = arith.cmpf oeq, %22, %63 : vector<4x128xf32>
    %cst_24 = arith.constant 6.000000e+00 : f32
    %65 = vector.broadcast %cst_24 : f32 to vector<4x128xf32>
    %66 = arith.cmpf oeq, %22, %65 : vector<4x128xf32>
    %cst_25 = arith.constant 7.000000e+00 : f32
    %67 = vector.broadcast %cst_25 : f32 to vector<4x128xf32>
    %68 = arith.cmpf oeq, %22, %67 : vector<4x128xf32>
    %cst_26 = arith.constant 8.000000e+00 : f32
    %69 = vector.broadcast %cst_26 : f32 to vector<4x128xf32>
    %70 = arith.cmpf oeq, %22, %69 : vector<4x128xf32>
    %cst_27 = arith.constant 9.000000e+00 : f32
    %71 = vector.broadcast %cst_27 : f32 to vector<4x128xf32>
    %72 = arith.cmpf oeq, %22, %71 : vector<4x128xf32>
    %cst_28 = arith.constant 1.000000e+01 : f32
    %73 = vector.broadcast %cst_28 : f32 to vector<4x128xf32>
    %74 = arith.cmpf oeq, %22, %73 : vector<4x128xf32>
    %cst_29 = arith.constant 1.100000e+01 : f32
    %75 = vector.broadcast %cst_29 : f32 to vector<4x128xf32>
    %76 = arith.cmpf oeq, %22, %75 : vector<4x128xf32>
    %cst_30 = arith.constant 1.200000e+01 : f32
    %77 = vector.broadcast %cst_30 : f32 to vector<4x128xf32>
    %78 = arith.cmpf oeq, %22, %77 : vector<4x128xf32>
    %cst_31 = arith.constant 1.300000e+01 : f32
    %79 = vector.broadcast %cst_31 : f32 to vector<4x128xf32>
    %80 = arith.cmpf oeq, %22, %79 : vector<4x128xf32>
    %cst_32 = arith.constant 1.400000e+01 : f32
    %81 = vector.broadcast %cst_32 : f32 to vector<4x128xf32>
    %82 = arith.cmpf oeq, %22, %81 : vector<4x128xf32>
    %cst_33 = arith.constant 1.500000e+01 : f32
    %83 = vector.broadcast %cst_33 : f32 to vector<4x128xf32>
    %84 = arith.cmpf oeq, %22, %83 : vector<4x128xf32>
    %cst_34 = arith.constant 1.600000e+01 : f32
    %85 = vector.broadcast %cst_34 : f32 to vector<4x128xf32>
    %86 = arith.cmpf oeq, %22, %85 : vector<4x128xf32>
    %cst_35 = arith.constant 1.700000e+01 : f32
    %87 = vector.broadcast %cst_35 : f32 to vector<4x128xf32>
    %88 = arith.cmpf oeq, %22, %87 : vector<4x128xf32>
    %cst_36 = arith.constant 0.000000e+00 : f32
    %89 = vector.broadcast %cst_36 : f32 to vector<4x128xf32>
    %cst_37 = arith.constant 0.000000e+00 : f32
    %90 = vector.broadcast %cst_37 : f32 to vector<4x128xf32>
    %91 = arith.select %58, %35, %90 : vector<4x128xi1>, vector<4x128xf32>
    %cst_38 = arith.constant dense<0.000000e+00> : vector<128xf32>
    %92 = vector.multi_reduction <add>, %91, %cst_38 [0] : vector<4x128xf32> to vector<128xf32>
    %93 = vector.shape_cast %92 : vector<128xf32> to vector<1x128xf32>
    %cst_39 = arith.constant 1.000000e+00 : f32
    %94 = vector.broadcast %cst_39 : f32 to vector<4x128xf32>
    %95 = arith.cmpf oeq, %26, %94 : vector<4x128xf32>
    %cst_40 = arith.constant 0.000000e+00 : f32
    %96 = vector.shape_cast %93 : vector<1x128xf32> to vector<1x128xf32>
    %97 = vector.broadcast %96 : vector<1x128xf32> to vector<4x128xf32>
    %98 = vector.broadcast %cst_40 : f32 to vector<4x128xf32>
    %99 = arith.select %95, %97, %98 : vector<4x128xi1>, vector<4x128xf32>
    %100 = arith.addf %89, %99 : vector<4x128xf32>
    %cst_41 = arith.constant 0.000000e+00 : f32
    %101 = vector.broadcast %cst_41 : f32 to vector<4x128xf32>
    %102 = arith.select %60, %35, %101 : vector<4x128xi1>, vector<4x128xf32>
    %cst_42 = arith.constant 0.000000e+00 : f32
    %103 = vector.broadcast %cst_42 : f32 to vector<4x128xf32>
    %104 = arith.select %58, %40, %103 : vector<4x128xi1>, vector<4x128xf32>
    %105 = arith.addf %102, %104 : vector<4x128xf32>
    %cst_43 = arith.constant dense<0.000000e+00> : vector<128xf32>
    %106 = vector.multi_reduction <add>, %105, %cst_43 [0] : vector<4x128xf32> to vector<128xf32>
    %107 = vector.shape_cast %106 : vector<128xf32> to vector<1x128xf32>
    %cst_44 = arith.constant 2.000000e+00 : f32
    %108 = vector.broadcast %cst_44 : f32 to vector<4x128xf32>
    %109 = arith.cmpf oeq, %26, %108 : vector<4x128xf32>
    %cst_45 = arith.constant 0.000000e+00 : f32
    %110 = vector.shape_cast %107 : vector<1x128xf32> to vector<1x128xf32>
    %111 = vector.broadcast %110 : vector<1x128xf32> to vector<4x128xf32>
    %112 = vector.broadcast %cst_45 : f32 to vector<4x128xf32>
    %113 = arith.select %109, %111, %112 : vector<4x128xi1>, vector<4x128xf32>
    %114 = arith.addf %100, %113 : vector<4x128xf32>
    %cst_46 = arith.constant 0.000000e+00 : f32
    %115 = vector.broadcast %cst_46 : f32 to vector<4x128xf32>
    %116 = arith.select %62, %35, %115 : vector<4x128xi1>, vector<4x128xf32>
    %cst_47 = arith.constant 0.000000e+00 : f32
    %117 = vector.broadcast %cst_47 : f32 to vector<4x128xf32>
    %118 = arith.select %60, %40, %117 : vector<4x128xi1>, vector<4x128xf32>
    %119 = arith.addf %116, %118 : vector<4x128xf32>
    %cst_48 = arith.constant 0.000000e+00 : f32
    %120 = vector.broadcast %cst_48 : f32 to vector<4x128xf32>
    %121 = arith.select %58, %45, %120 : vector<4x128xi1>, vector<4x128xf32>
    %122 = arith.addf %119, %121 : vector<4x128xf32>
    %cst_49 = arith.constant dense<0.000000e+00> : vector<128xf32>
    %123 = vector.multi_reduction <add>, %122, %cst_49 [0] : vector<4x128xf32> to vector<128xf32>
    %124 = vector.shape_cast %123 : vector<128xf32> to vector<1x128xf32>
    %cst_50 = arith.constant 3.000000e+00 : f32
    %125 = vector.broadcast %cst_50 : f32 to vector<4x128xf32>
    %126 = arith.cmpf oeq, %26, %125 : vector<4x128xf32>
    %cst_51 = arith.constant 0.000000e+00 : f32
    %127 = vector.shape_cast %124 : vector<1x128xf32> to vector<1x128xf32>
    %128 = vector.broadcast %127 : vector<1x128xf32> to vector<4x128xf32>
    %129 = vector.broadcast %cst_51 : f32 to vector<4x128xf32>
    %130 = arith.select %126, %128, %129 : vector<4x128xi1>, vector<4x128xf32>
    %131 = arith.addf %114, %130 : vector<4x128xf32>
    %cst_52 = arith.constant 0.000000e+00 : f32
    %132 = vector.broadcast %cst_52 : f32 to vector<4x128xf32>
    %133 = arith.select %64, %35, %132 : vector<4x128xi1>, vector<4x128xf32>
    %cst_53 = arith.constant 0.000000e+00 : f32
    %134 = vector.broadcast %cst_53 : f32 to vector<4x128xf32>
    %135 = arith.select %62, %40, %134 : vector<4x128xi1>, vector<4x128xf32>
    %136 = arith.addf %133, %135 : vector<4x128xf32>
    %cst_54 = arith.constant 0.000000e+00 : f32
    %137 = vector.broadcast %cst_54 : f32 to vector<4x128xf32>
    %138 = arith.select %60, %45, %137 : vector<4x128xi1>, vector<4x128xf32>
    %139 = arith.addf %136, %138 : vector<4x128xf32>
    %cst_55 = arith.constant 0.000000e+00 : f32
    %140 = vector.broadcast %cst_55 : f32 to vector<4x128xf32>
    %141 = arith.select %58, %47, %140 : vector<4x128xi1>, vector<4x128xf32>
    %142 = arith.addf %139, %141 : vector<4x128xf32>
    %cst_56 = arith.constant dense<0.000000e+00> : vector<128xf32>
    %143 = vector.multi_reduction <add>, %142, %cst_56 [0] : vector<4x128xf32> to vector<128xf32>
    %144 = vector.shape_cast %143 : vector<128xf32> to vector<1x128xf32>
    %cst_57 = arith.constant 4.000000e+00 : f32
    %145 = vector.broadcast %cst_57 : f32 to vector<4x128xf32>
    %146 = arith.cmpf oeq, %26, %145 : vector<4x128xf32>
    %cst_58 = arith.constant 0.000000e+00 : f32
    %147 = vector.shape_cast %144 : vector<1x128xf32> to vector<1x128xf32>
    %148 = vector.broadcast %147 : vector<1x128xf32> to vector<4x128xf32>
    %149 = vector.broadcast %cst_58 : f32 to vector<4x128xf32>
    %150 = arith.select %146, %148, %149 : vector<4x128xi1>, vector<4x128xf32>
    %151 = arith.addf %131, %150 : vector<4x128xf32>
    %cst_59 = arith.constant 0.000000e+00 : f32
    %152 = vector.broadcast %cst_59 : f32 to vector<4x128xf32>
    %153 = arith.select %66, %35, %152 : vector<4x128xi1>, vector<4x128xf32>
    %cst_60 = arith.constant 0.000000e+00 : f32
    %154 = vector.broadcast %cst_60 : f32 to vector<4x128xf32>
    %155 = arith.select %64, %40, %154 : vector<4x128xi1>, vector<4x128xf32>
    %156 = arith.addf %153, %155 : vector<4x128xf32>
    %cst_61 = arith.constant 0.000000e+00 : f32
    %157 = vector.broadcast %cst_61 : f32 to vector<4x128xf32>
    %158 = arith.select %62, %45, %157 : vector<4x128xi1>, vector<4x128xf32>
    %159 = arith.addf %156, %158 : vector<4x128xf32>
    %cst_62 = arith.constant 0.000000e+00 : f32
    %160 = vector.broadcast %cst_62 : f32 to vector<4x128xf32>
    %161 = arith.select %60, %47, %160 : vector<4x128xi1>, vector<4x128xf32>
    %162 = arith.addf %159, %161 : vector<4x128xf32>
    %cst_63 = arith.constant dense<0.000000e+00> : vector<128xf32>
    %163 = vector.multi_reduction <add>, %162, %cst_63 [0] : vector<4x128xf32> to vector<128xf32>
    %164 = vector.shape_cast %163 : vector<128xf32> to vector<1x128xf32>
    %cst_64 = arith.constant 5.000000e+00 : f32
    %165 = vector.broadcast %cst_64 : f32 to vector<4x128xf32>
    %166 = arith.cmpf oeq, %26, %165 : vector<4x128xf32>
    %cst_65 = arith.constant 0.000000e+00 : f32
    %167 = vector.shape_cast %164 : vector<1x128xf32> to vector<1x128xf32>
    %168 = vector.broadcast %167 : vector<1x128xf32> to vector<4x128xf32>
    %169 = vector.broadcast %cst_65 : f32 to vector<4x128xf32>
    %170 = arith.select %166, %168, %169 : vector<4x128xi1>, vector<4x128xf32>
    %171 = arith.addf %151, %170 : vector<4x128xf32>
    %cst_66 = arith.constant 0.000000e+00 : f32
    %172 = vector.broadcast %cst_66 : f32 to vector<4x128xf32>
    %173 = arith.select %68, %35, %172 : vector<4x128xi1>, vector<4x128xf32>
    %cst_67 = arith.constant 0.000000e+00 : f32
    %174 = vector.broadcast %cst_67 : f32 to vector<4x128xf32>
    %175 = arith.select %66, %40, %174 : vector<4x128xi1>, vector<4x128xf32>
    %176 = arith.addf %173, %175 : vector<4x128xf32>
    %cst_68 = arith.constant 0.000000e+00 : f32
    %177 = vector.broadcast %cst_68 : f32 to vector<4x128xf32>
    %178 = arith.select %64, %45, %177 : vector<4x128xi1>, vector<4x128xf32>
    %179 = arith.addf %176, %178 : vector<4x128xf32>
    %cst_69 = arith.constant 0.000000e+00 : f32
    %180 = vector.broadcast %cst_69 : f32 to vector<4x128xf32>
    %181 = arith.select %62, %47, %180 : vector<4x128xi1>, vector<4x128xf32>
    %182 = arith.addf %179, %181 : vector<4x128xf32>
    %cst_70 = arith.constant dense<0.000000e+00> : vector<128xf32>
    %183 = vector.multi_reduction <add>, %182, %cst_70 [0] : vector<4x128xf32> to vector<128xf32>
    %184 = vector.shape_cast %183 : vector<128xf32> to vector<1x128xf32>
    %cst_71 = arith.constant 6.000000e+00 : f32
    %185 = vector.broadcast %cst_71 : f32 to vector<4x128xf32>
    %186 = arith.cmpf oeq, %26, %185 : vector<4x128xf32>
    %cst_72 = arith.constant 0.000000e+00 : f32
    %187 = vector.shape_cast %184 : vector<1x128xf32> to vector<1x128xf32>
    %188 = vector.broadcast %187 : vector<1x128xf32> to vector<4x128xf32>
    %189 = vector.broadcast %cst_72 : f32 to vector<4x128xf32>
    %190 = arith.select %186, %188, %189 : vector<4x128xi1>, vector<4x128xf32>
    %191 = arith.addf %171, %190 : vector<4x128xf32>
    %cst_73 = arith.constant 0.000000e+00 : f32
    %192 = vector.broadcast %cst_73 : f32 to vector<4x128xf32>
    %193 = arith.select %70, %35, %192 : vector<4x128xi1>, vector<4x128xf32>
    %cst_74 = arith.constant 0.000000e+00 : f32
    %194 = vector.broadcast %cst_74 : f32 to vector<4x128xf32>
    %195 = arith.select %68, %40, %194 : vector<4x128xi1>, vector<4x128xf32>
    %196 = arith.addf %193, %195 : vector<4x128xf32>
    %cst_75 = arith.constant 0.000000e+00 : f32
    %197 = vector.broadcast %cst_75 : f32 to vector<4x128xf32>
    %198 = arith.select %66, %45, %197 : vector<4x128xi1>, vector<4x128xf32>
    %199 = arith.addf %196, %198 : vector<4x128xf32>
    %cst_76 = arith.constant 0.000000e+00 : f32
    %200 = vector.broadcast %cst_76 : f32 to vector<4x128xf32>
    %201 = arith.select %64, %47, %200 : vector<4x128xi1>, vector<4x128xf32>
    %202 = arith.addf %199, %201 : vector<4x128xf32>
    %cst_77 = arith.constant dense<0.000000e+00> : vector<128xf32>
    %203 = vector.multi_reduction <add>, %202, %cst_77 [0] : vector<4x128xf32> to vector<128xf32>
    %204 = vector.shape_cast %203 : vector<128xf32> to vector<1x128xf32>
    %cst_78 = arith.constant 7.000000e+00 : f32
    %205 = vector.broadcast %cst_78 : f32 to vector<4x128xf32>
    %206 = arith.cmpf oeq, %26, %205 : vector<4x128xf32>
    %cst_79 = arith.constant 0.000000e+00 : f32
    %207 = vector.shape_cast %204 : vector<1x128xf32> to vector<1x128xf32>
    %208 = vector.broadcast %207 : vector<1x128xf32> to vector<4x128xf32>
    %209 = vector.broadcast %cst_79 : f32 to vector<4x128xf32>
    %210 = arith.select %206, %208, %209 : vector<4x128xi1>, vector<4x128xf32>
    %211 = arith.addf %191, %210 : vector<4x128xf32>
    %cst_80 = arith.constant 0.000000e+00 : f32
    %212 = vector.broadcast %cst_80 : f32 to vector<4x128xf32>
    %213 = arith.select %72, %35, %212 : vector<4x128xi1>, vector<4x128xf32>
    %cst_81 = arith.constant 0.000000e+00 : f32
    %214 = vector.broadcast %cst_81 : f32 to vector<4x128xf32>
    %215 = arith.select %70, %40, %214 : vector<4x128xi1>, vector<4x128xf32>
    %216 = arith.addf %213, %215 : vector<4x128xf32>
    %cst_82 = arith.constant 0.000000e+00 : f32
    %217 = vector.broadcast %cst_82 : f32 to vector<4x128xf32>
    %218 = arith.select %68, %45, %217 : vector<4x128xi1>, vector<4x128xf32>
    %219 = arith.addf %216, %218 : vector<4x128xf32>
    %cst_83 = arith.constant 0.000000e+00 : f32
    %220 = vector.broadcast %cst_83 : f32 to vector<4x128xf32>
    %221 = arith.select %66, %47, %220 : vector<4x128xi1>, vector<4x128xf32>
    %222 = arith.addf %219, %221 : vector<4x128xf32>
    %cst_84 = arith.constant dense<0.000000e+00> : vector<128xf32>
    %223 = vector.multi_reduction <add>, %222, %cst_84 [0] : vector<4x128xf32> to vector<128xf32>
    %224 = vector.shape_cast %223 : vector<128xf32> to vector<1x128xf32>
    %cst_85 = arith.constant 8.000000e+00 : f32
    %225 = vector.broadcast %cst_85 : f32 to vector<4x128xf32>
    %226 = arith.cmpf oeq, %26, %225 : vector<4x128xf32>
    %cst_86 = arith.constant 0.000000e+00 : f32
    %227 = vector.shape_cast %224 : vector<1x128xf32> to vector<1x128xf32>
    %228 = vector.broadcast %227 : vector<1x128xf32> to vector<4x128xf32>
    %229 = vector.broadcast %cst_86 : f32 to vector<4x128xf32>
    %230 = arith.select %226, %228, %229 : vector<4x128xi1>, vector<4x128xf32>
    %231 = arith.addf %211, %230 : vector<4x128xf32>
    %cst_87 = arith.constant 0.000000e+00 : f32
    %232 = vector.broadcast %cst_87 : f32 to vector<4x128xf32>
    %233 = arith.select %74, %35, %232 : vector<4x128xi1>, vector<4x128xf32>
    %cst_88 = arith.constant 0.000000e+00 : f32
    %234 = vector.broadcast %cst_88 : f32 to vector<4x128xf32>
    %235 = arith.select %72, %40, %234 : vector<4x128xi1>, vector<4x128xf32>
    %236 = arith.addf %233, %235 : vector<4x128xf32>
    %cst_89 = arith.constant 0.000000e+00 : f32
    %237 = vector.broadcast %cst_89 : f32 to vector<4x128xf32>
    %238 = arith.select %70, %45, %237 : vector<4x128xi1>, vector<4x128xf32>
    %239 = arith.addf %236, %238 : vector<4x128xf32>
    %cst_90 = arith.constant 0.000000e+00 : f32
    %240 = vector.broadcast %cst_90 : f32 to vector<4x128xf32>
    %241 = arith.select %68, %47, %240 : vector<4x128xi1>, vector<4x128xf32>
    %242 = arith.addf %239, %241 : vector<4x128xf32>
    %cst_91 = arith.constant dense<0.000000e+00> : vector<128xf32>
    %243 = vector.multi_reduction <add>, %242, %cst_91 [0] : vector<4x128xf32> to vector<128xf32>
    %244 = vector.shape_cast %243 : vector<128xf32> to vector<1x128xf32>
    %cst_92 = arith.constant 9.000000e+00 : f32
    %245 = vector.broadcast %cst_92 : f32 to vector<4x128xf32>
    %246 = arith.cmpf oeq, %26, %245 : vector<4x128xf32>
    %cst_93 = arith.constant 0.000000e+00 : f32
    %247 = vector.shape_cast %244 : vector<1x128xf32> to vector<1x128xf32>
    %248 = vector.broadcast %247 : vector<1x128xf32> to vector<4x128xf32>
    %249 = vector.broadcast %cst_93 : f32 to vector<4x128xf32>
    %250 = arith.select %246, %248, %249 : vector<4x128xi1>, vector<4x128xf32>
    %251 = arith.addf %231, %250 : vector<4x128xf32>
    %cst_94 = arith.constant 0.000000e+00 : f32
    %252 = vector.broadcast %cst_94 : f32 to vector<4x128xf32>
    %253 = arith.select %76, %35, %252 : vector<4x128xi1>, vector<4x128xf32>
    %cst_95 = arith.constant 0.000000e+00 : f32
    %254 = vector.broadcast %cst_95 : f32 to vector<4x128xf32>
    %255 = arith.select %74, %40, %254 : vector<4x128xi1>, vector<4x128xf32>
    %256 = arith.addf %253, %255 : vector<4x128xf32>
    %cst_96 = arith.constant 0.000000e+00 : f32
    %257 = vector.broadcast %cst_96 : f32 to vector<4x128xf32>
    %258 = arith.select %72, %45, %257 : vector<4x128xi1>, vector<4x128xf32>
    %259 = arith.addf %256, %258 : vector<4x128xf32>
    %cst_97 = arith.constant 0.000000e+00 : f32
    %260 = vector.broadcast %cst_97 : f32 to vector<4x128xf32>
    %261 = arith.select %70, %47, %260 : vector<4x128xi1>, vector<4x128xf32>
    %262 = arith.addf %259, %261 : vector<4x128xf32>
    %cst_98 = arith.constant dense<0.000000e+00> : vector<128xf32>
    %263 = vector.multi_reduction <add>, %262, %cst_98 [0] : vector<4x128xf32> to vector<128xf32>
    %264 = vector.shape_cast %263 : vector<128xf32> to vector<1x128xf32>
    %cst_99 = arith.constant 1.000000e+01 : f32
    %265 = vector.broadcast %cst_99 : f32 to vector<4x128xf32>
    %266 = arith.cmpf oeq, %26, %265 : vector<4x128xf32>
    %cst_100 = arith.constant 0.000000e+00 : f32
    %267 = vector.shape_cast %264 : vector<1x128xf32> to vector<1x128xf32>
    %268 = vector.broadcast %267 : vector<1x128xf32> to vector<4x128xf32>
    %269 = vector.broadcast %cst_100 : f32 to vector<4x128xf32>
    %270 = arith.select %266, %268, %269 : vector<4x128xi1>, vector<4x128xf32>
    %271 = arith.addf %251, %270 : vector<4x128xf32>
    %cst_101 = arith.constant 0.000000e+00 : f32
    %272 = vector.broadcast %cst_101 : f32 to vector<4x128xf32>
    %273 = arith.select %78, %35, %272 : vector<4x128xi1>, vector<4x128xf32>
    %cst_102 = arith.constant 0.000000e+00 : f32
    %274 = vector.broadcast %cst_102 : f32 to vector<4x128xf32>
    %275 = arith.select %76, %40, %274 : vector<4x128xi1>, vector<4x128xf32>
    %276 = arith.addf %273, %275 : vector<4x128xf32>
    %cst_103 = arith.constant 0.000000e+00 : f32
    %277 = vector.broadcast %cst_103 : f32 to vector<4x128xf32>
    %278 = arith.select %74, %45, %277 : vector<4x128xi1>, vector<4x128xf32>
    %279 = arith.addf %276, %278 : vector<4x128xf32>
    %cst_104 = arith.constant 0.000000e+00 : f32
    %280 = vector.broadcast %cst_104 : f32 to vector<4x128xf32>
    %281 = arith.select %72, %47, %280 : vector<4x128xi1>, vector<4x128xf32>
    %282 = arith.addf %279, %281 : vector<4x128xf32>
    %cst_105 = arith.constant dense<0.000000e+00> : vector<128xf32>
    %283 = vector.multi_reduction <add>, %282, %cst_105 [0] : vector<4x128xf32> to vector<128xf32>
    %284 = vector.shape_cast %283 : vector<128xf32> to vector<1x128xf32>
    %cst_106 = arith.constant 1.100000e+01 : f32
    %285 = vector.broadcast %cst_106 : f32 to vector<4x128xf32>
    %286 = arith.cmpf oeq, %26, %285 : vector<4x128xf32>
    %cst_107 = arith.constant 0.000000e+00 : f32
    %287 = vector.shape_cast %284 : vector<1x128xf32> to vector<1x128xf32>
    %288 = vector.broadcast %287 : vector<1x128xf32> to vector<4x128xf32>
    %289 = vector.broadcast %cst_107 : f32 to vector<4x128xf32>
    %290 = arith.select %286, %288, %289 : vector<4x128xi1>, vector<4x128xf32>
    %291 = arith.addf %271, %290 : vector<4x128xf32>
    %cst_108 = arith.constant 0.000000e+00 : f32
    %292 = vector.broadcast %cst_108 : f32 to vector<4x128xf32>
    %293 = arith.select %80, %35, %292 : vector<4x128xi1>, vector<4x128xf32>
    %cst_109 = arith.constant 0.000000e+00 : f32
    %294 = vector.broadcast %cst_109 : f32 to vector<4x128xf32>
    %295 = arith.select %78, %40, %294 : vector<4x128xi1>, vector<4x128xf32>
    %296 = arith.addf %293, %295 : vector<4x128xf32>
    %cst_110 = arith.constant 0.000000e+00 : f32
    %297 = vector.broadcast %cst_110 : f32 to vector<4x128xf32>
    %298 = arith.select %76, %45, %297 : vector<4x128xi1>, vector<4x128xf32>
    %299 = arith.addf %296, %298 : vector<4x128xf32>
    %cst_111 = arith.constant 0.000000e+00 : f32
    %300 = vector.broadcast %cst_111 : f32 to vector<4x128xf32>
    %301 = arith.select %74, %47, %300 : vector<4x128xi1>, vector<4x128xf32>
    %302 = arith.addf %299, %301 : vector<4x128xf32>
    %cst_112 = arith.constant dense<0.000000e+00> : vector<128xf32>
    %303 = vector.multi_reduction <add>, %302, %cst_112 [0] : vector<4x128xf32> to vector<128xf32>
    %304 = vector.shape_cast %303 : vector<128xf32> to vector<1x128xf32>
    %cst_113 = arith.constant 1.200000e+01 : f32
    %305 = vector.broadcast %cst_113 : f32 to vector<4x128xf32>
    %306 = arith.cmpf oeq, %26, %305 : vector<4x128xf32>
    %cst_114 = arith.constant 0.000000e+00 : f32
    %307 = vector.shape_cast %304 : vector<1x128xf32> to vector<1x128xf32>
    %308 = vector.broadcast %307 : vector<1x128xf32> to vector<4x128xf32>
    %309 = vector.broadcast %cst_114 : f32 to vector<4x128xf32>
    %310 = arith.select %306, %308, %309 : vector<4x128xi1>, vector<4x128xf32>
    %311 = arith.addf %291, %310 : vector<4x128xf32>
    %cst_115 = arith.constant 0.000000e+00 : f32
    %312 = vector.broadcast %cst_115 : f32 to vector<4x128xf32>
    %313 = arith.select %82, %35, %312 : vector<4x128xi1>, vector<4x128xf32>
    %cst_116 = arith.constant 0.000000e+00 : f32
    %314 = vector.broadcast %cst_116 : f32 to vector<4x128xf32>
    %315 = arith.select %80, %40, %314 : vector<4x128xi1>, vector<4x128xf32>
    %316 = arith.addf %313, %315 : vector<4x128xf32>
    %cst_117 = arith.constant 0.000000e+00 : f32
    %317 = vector.broadcast %cst_117 : f32 to vector<4x128xf32>
    %318 = arith.select %78, %45, %317 : vector<4x128xi1>, vector<4x128xf32>
    %319 = arith.addf %316, %318 : vector<4x128xf32>
    %cst_118 = arith.constant 0.000000e+00 : f32
    %320 = vector.broadcast %cst_118 : f32 to vector<4x128xf32>
    %321 = arith.select %76, %47, %320 : vector<4x128xi1>, vector<4x128xf32>
    %322 = arith.addf %319, %321 : vector<4x128xf32>
    %cst_119 = arith.constant dense<0.000000e+00> : vector<128xf32>
    %323 = vector.multi_reduction <add>, %322, %cst_119 [0] : vector<4x128xf32> to vector<128xf32>
    %324 = vector.shape_cast %323 : vector<128xf32> to vector<1x128xf32>
    %cst_120 = arith.constant 1.300000e+01 : f32
    %325 = vector.broadcast %cst_120 : f32 to vector<4x128xf32>
    %326 = arith.cmpf oeq, %26, %325 : vector<4x128xf32>
    %cst_121 = arith.constant 0.000000e+00 : f32
    %327 = vector.shape_cast %324 : vector<1x128xf32> to vector<1x128xf32>
    %328 = vector.broadcast %327 : vector<1x128xf32> to vector<4x128xf32>
    %329 = vector.broadcast %cst_121 : f32 to vector<4x128xf32>
    %330 = arith.select %326, %328, %329 : vector<4x128xi1>, vector<4x128xf32>
    %331 = arith.addf %311, %330 : vector<4x128xf32>
    %cst_122 = arith.constant 0.000000e+00 : f32
    %332 = vector.broadcast %cst_122 : f32 to vector<4x128xf32>
    %333 = arith.select %84, %35, %332 : vector<4x128xi1>, vector<4x128xf32>
    %cst_123 = arith.constant 0.000000e+00 : f32
    %334 = vector.broadcast %cst_123 : f32 to vector<4x128xf32>
    %335 = arith.select %82, %40, %334 : vector<4x128xi1>, vector<4x128xf32>
    %336 = arith.addf %333, %335 : vector<4x128xf32>
    %cst_124 = arith.constant 0.000000e+00 : f32
    %337 = vector.broadcast %cst_124 : f32 to vector<4x128xf32>
    %338 = arith.select %80, %45, %337 : vector<4x128xi1>, vector<4x128xf32>
    %339 = arith.addf %336, %338 : vector<4x128xf32>
    %cst_125 = arith.constant 0.000000e+00 : f32
    %340 = vector.broadcast %cst_125 : f32 to vector<4x128xf32>
    %341 = arith.select %78, %47, %340 : vector<4x128xi1>, vector<4x128xf32>
    %342 = arith.addf %339, %341 : vector<4x128xf32>
    %cst_126 = arith.constant dense<0.000000e+00> : vector<128xf32>
    %343 = vector.multi_reduction <add>, %342, %cst_126 [0] : vector<4x128xf32> to vector<128xf32>
    %344 = vector.shape_cast %343 : vector<128xf32> to vector<1x128xf32>
    %cst_127 = arith.constant 1.400000e+01 : f32
    %345 = vector.broadcast %cst_127 : f32 to vector<4x128xf32>
    %346 = arith.cmpf oeq, %26, %345 : vector<4x128xf32>
    %cst_128 = arith.constant 0.000000e+00 : f32
    %347 = vector.shape_cast %344 : vector<1x128xf32> to vector<1x128xf32>
    %348 = vector.broadcast %347 : vector<1x128xf32> to vector<4x128xf32>
    %349 = vector.broadcast %cst_128 : f32 to vector<4x128xf32>
    %350 = arith.select %346, %348, %349 : vector<4x128xi1>, vector<4x128xf32>
    %351 = arith.addf %331, %350 : vector<4x128xf32>
    %cst_129 = arith.constant 0.000000e+00 : f32
    %352 = vector.broadcast %cst_129 : f32 to vector<4x128xf32>
    %353 = arith.select %86, %35, %352 : vector<4x128xi1>, vector<4x128xf32>
    %cst_130 = arith.constant 0.000000e+00 : f32
    %354 = vector.broadcast %cst_130 : f32 to vector<4x128xf32>
    %355 = arith.select %84, %40, %354 : vector<4x128xi1>, vector<4x128xf32>
    %356 = arith.addf %353, %355 : vector<4x128xf32>
    %cst_131 = arith.constant 0.000000e+00 : f32
    %357 = vector.broadcast %cst_131 : f32 to vector<4x128xf32>
    %358 = arith.select %82, %45, %357 : vector<4x128xi1>, vector<4x128xf32>
    %359 = arith.addf %356, %358 : vector<4x128xf32>
    %cst_132 = arith.constant 0.000000e+00 : f32
    %360 = vector.broadcast %cst_132 : f32 to vector<4x128xf32>
    %361 = arith.select %80, %47, %360 : vector<4x128xi1>, vector<4x128xf32>
    %362 = arith.addf %359, %361 : vector<4x128xf32>
    %cst_133 = arith.constant dense<0.000000e+00> : vector<128xf32>
    %363 = vector.multi_reduction <add>, %362, %cst_133 [0] : vector<4x128xf32> to vector<128xf32>
    %364 = vector.shape_cast %363 : vector<128xf32> to vector<1x128xf32>
    %cst_134 = arith.constant 1.500000e+01 : f32
    %365 = vector.broadcast %cst_134 : f32 to vector<4x128xf32>
    %366 = arith.cmpf oeq, %26, %365 : vector<4x128xf32>
    %cst_135 = arith.constant 0.000000e+00 : f32
    %367 = vector.shape_cast %364 : vector<1x128xf32> to vector<1x128xf32>
    %368 = vector.broadcast %367 : vector<1x128xf32> to vector<4x128xf32>
    %369 = vector.broadcast %cst_135 : f32 to vector<4x128xf32>
    %370 = arith.select %366, %368, %369 : vector<4x128xi1>, vector<4x128xf32>
    %371 = arith.addf %351, %370 : vector<4x128xf32>
    %cst_136 = arith.constant 0.000000e+00 : f32
    %372 = vector.broadcast %cst_136 : f32 to vector<4x128xf32>
    %373 = arith.select %88, %35, %372 : vector<4x128xi1>, vector<4x128xf32>
    %cst_137 = arith.constant 0.000000e+00 : f32
    %374 = vector.broadcast %cst_137 : f32 to vector<4x128xf32>
    %375 = arith.select %86, %40, %374 : vector<4x128xi1>, vector<4x128xf32>
    %376 = arith.addf %373, %375 : vector<4x128xf32>
    %cst_138 = arith.constant 0.000000e+00 : f32
    %377 = vector.broadcast %cst_138 : f32 to vector<4x128xf32>
    %378 = arith.select %84, %45, %377 : vector<4x128xi1>, vector<4x128xf32>
    %379 = arith.addf %376, %378 : vector<4x128xf32>
    %cst_139 = arith.constant 0.000000e+00 : f32
    %380 = vector.broadcast %cst_139 : f32 to vector<4x128xf32>
    %381 = arith.select %82, %47, %380 : vector<4x128xi1>, vector<4x128xf32>
    %382 = arith.addf %379, %381 : vector<4x128xf32>
    %cst_140 = arith.constant dense<0.000000e+00> : vector<128xf32>
    %383 = vector.multi_reduction <add>, %382, %cst_140 [0] : vector<4x128xf32> to vector<128xf32>
    %384 = vector.shape_cast %383 : vector<128xf32> to vector<1x128xf32>
    %cst_141 = arith.constant 1.600000e+01 : f32
    %385 = vector.broadcast %cst_141 : f32 to vector<4x128xf32>
    %386 = arith.cmpf oeq, %26, %385 : vector<4x128xf32>
    %cst_142 = arith.constant 0.000000e+00 : f32
    %387 = vector.shape_cast %384 : vector<1x128xf32> to vector<1x128xf32>
    %388 = vector.broadcast %387 : vector<1x128xf32> to vector<4x128xf32>
    %389 = vector.broadcast %cst_142 : f32 to vector<4x128xf32>
    %390 = arith.select %386, %388, %389 : vector<4x128xi1>, vector<4x128xf32>
    %391 = arith.addf %371, %390 : vector<4x128xf32>
    %cst_143 = arith.constant 0.000000e+00 : f32
    %392 = vector.broadcast %cst_143 : f32 to vector<4x128xf32>
    %393 = arith.select %88, %40, %392 : vector<4x128xi1>, vector<4x128xf32>
    %cst_144 = arith.constant 0.000000e+00 : f32
    %394 = vector.broadcast %cst_144 : f32 to vector<4x128xf32>
    %395 = arith.select %86, %45, %394 : vector<4x128xi1>, vector<4x128xf32>
    %396 = arith.addf %393, %395 : vector<4x128xf32>
    %cst_145 = arith.constant 0.000000e+00 : f32
    %397 = vector.broadcast %cst_145 : f32 to vector<4x128xf32>
    %398 = arith.select %84, %47, %397 : vector<4x128xi1>, vector<4x128xf32>
    %399 = arith.addf %396, %398 : vector<4x128xf32>
    %cst_146 = arith.constant dense<0.000000e+00> : vector<128xf32>
    %400 = vector.multi_reduction <add>, %399, %cst_146 [0] : vector<4x128xf32> to vector<128xf32>
    %401 = vector.shape_cast %400 : vector<128xf32> to vector<1x128xf32>
    %cst_147 = arith.constant 1.700000e+01 : f32
    %402 = vector.broadcast %cst_147 : f32 to vector<4x128xf32>
    %403 = arith.cmpf oeq, %26, %402 : vector<4x128xf32>
    %cst_148 = arith.constant 0.000000e+00 : f32
    %404 = vector.shape_cast %401 : vector<1x128xf32> to vector<1x128xf32>
    %405 = vector.broadcast %404 : vector<1x128xf32> to vector<4x128xf32>
    %406 = vector.broadcast %cst_148 : f32 to vector<4x128xf32>
    %407 = arith.select %403, %405, %406 : vector<4x128xi1>, vector<4x128xf32>
    %408 = arith.addf %391, %407 : vector<4x128xf32>
    %cst_149 = arith.constant 0.000000e+00 : f32
    %409 = vector.broadcast %cst_149 : f32 to vector<4x128xf32>
    %410 = arith.select %88, %45, %409 : vector<4x128xi1>, vector<4x128xf32>
    %cst_150 = arith.constant 0.000000e+00 : f32
    %411 = vector.broadcast %cst_150 : f32 to vector<4x128xf32>
    %412 = arith.select %86, %47, %411 : vector<4x128xi1>, vector<4x128xf32>
    %413 = arith.addf %410, %412 : vector<4x128xf32>
    %cst_151 = arith.constant dense<0.000000e+00> : vector<128xf32>
    %414 = vector.multi_reduction <add>, %413, %cst_151 [0] : vector<4x128xf32> to vector<128xf32>
    %415 = vector.shape_cast %414 : vector<128xf32> to vector<1x128xf32>
    %cst_152 = arith.constant 1.800000e+01 : f32
    %416 = vector.broadcast %cst_152 : f32 to vector<4x128xf32>
    %417 = arith.cmpf oeq, %26, %416 : vector<4x128xf32>
    %cst_153 = arith.constant 0.000000e+00 : f32
    %418 = vector.shape_cast %415 : vector<1x128xf32> to vector<1x128xf32>
    %419 = vector.broadcast %418 : vector<1x128xf32> to vector<4x128xf32>
    %420 = vector.broadcast %cst_153 : f32 to vector<4x128xf32>
    %421 = arith.select %417, %419, %420 : vector<4x128xi1>, vector<4x128xf32>
    %422 = arith.addf %408, %421 : vector<4x128xf32>
    %423 = vector.broadcast %56 : vector<1x128xf32> to vector<4x128xf32>
    %424 = arith.mulf %422, %423 : vector<4x128xf32>
    %c0_154 = arith.constant 0 : index
    %c0_155 = arith.constant 0 : index
    %c0_156 = arith.constant 0 : index
    %425 = vector.load %arg3[%c0_154, %c0_155, %c0_156] : memref<1x4x128xf32, #tpu.memory_space<vmem>>, vector<1x4x128xf32>
    %426 = vector.shape_cast %425 : vector<1x4x128xf32> to vector<4x128xf32>
    %427 = vector.shape_cast %424 : vector<4x128xf32> to vector<1x4x128xf32>
    tpu.vector_store %arg3[%c0_154, %c0_155, %c0_156], %427 {strides = array<i32>} : memref<1x4x128xf32, #tpu.memory_space<vmem>>, vector<1x4x128xf32>,
    return
  }
  func.func @transform_0(%arg0: i32, %arg1: i32) -> (i32, i32, i32) {
    %c0_i32 = arith.constant 0 : i32
    %c0_i32_0 = arith.constant 0 : i32
    return %arg0, %c0_i32, %arg1 : i32, i32, i32
  }
  func.func @transform_1(%arg0: i32, %arg1: i32) -> (i32, i32, i32) {
    %c0_i32 = arith.constant 0 : i32
    %c0_i32_0 = arith.constant 0 : i32
    return %arg0, %c0_i32, %arg1 : i32, i32, i32
  }
}

</mosaic_0001>

<llo_original>
// kernel: tpu_custom_call.1
$region0: #{tpu_custom_call.1}
  #allocation0 [shape = 'u32[]', space=smem, size = 0x4, offset = 0x4, fixed_abs, tag = 'smem constant byte address 0x4 - core index']
  #allocation1 [shape = 'u32[144,128]{1,0:T(1,128)}', space=vmem, size = 0x12000, scoped, tag = 'internal scratch']
  %s0 = inlined_call_operand.hbm [shape: f32[2,4,256], index: 0, kind: input, shape index: {}]
  %s1 = inlined_call_operand.hbm [shape: f32[2,4,256], index: 1, kind: output, shape index: {}]
  %s2 = sld [smem:[#allocation0]]
  $region41: #{tpu_custom_call.1} parent=0
    _
  %s4 = ssub.s32 1, %s2
  %s5 = scalar_select 0, %s4, %s2
  $region1: #{tpu_custom_call.1} parent=0
    #allocation2 [shape = 'u8[4096]{0}', space=vmem, size = 0x1000, scoped, tag = 'input window, operand 0']
    #allocation3 [shape = 's32[2]{0}', space=sflag, size = 0x8, scoped, tag = 'scoped memory for tpu_custom_call.1']
    #allocation4 [shape = 's32[2]{0}', space=sflag, size = 0x8, scoped, tag = 'scoped memory for tpu_custom_call.1']
    #allocation5 [shape = 'u8[4096]{0}', space=vmem, size = 0x1000, scoped, tag = 'output window, operand 0']
    %6 = vsyncpa [#allocation3], 0
    %s7 = scalar_lea.sflag [#allocation3], 1
    %8 = vsyncpa %s7, 0
    %9 = vsyncpa [#allocation4], 0
    %s10 = scalar_lea.sflag [#allocation4], 1
    %11 = vsyncpa %s10, 0
    loop: start=0, step=1, limit=6
    $region2: #{tpu_custom_call.1} parent=1 // loop_pre_header
      _
    $region3: #{tpu_custom_call.1} parent=1 // loop_header
      %s13 = sphi 0, %s17
      %p14 = scmp.ge.s32.totalorder %s13, 6
      %s20 = sphi 0, %s32
      %s21 = sphi 0, %s28
      %s22 = sphi 0, %s20
      %s23 = sphi 0, %s21
      %s24 = sphi 0, %s22
      %s25 = sphi 0, %s23
      %s37 = sphi 0, %s39
      %s40 = sphi 0, %s37
      %s41 = sphi 0, %s40
      %s57 = sphi 0, %s41
      %s65 = sphi 0, %s67
      %s68 = sphi 0, %s65
      %s69 = sphi 0, %s68
      %s85 = sphi 0, %s69
    $region4: #{tpu_custom_call.1} parent=1 // loop_header_branch
      %16 = sbr.rel (%p14) target = $region8
    $region5: #{tpu_custom_call.1} parent=1 // loop_body
      %s18 = ssub.s32 %s13, 1
      %s19 = ssub.s32 %s13, 2
      %s26 = sadd.s32 1, %s21
      %p27 = scmp.ge.s32.totalorder %s26, 2
      %s28 = scalar_select %p27, 0, %s26
      %s29 = sadd.s32 1, %s20
      %s30 = scalar_select %p27, %s29, %s20
      %p31 = scmp.ge.s32.totalorder %s30, 2
      %s32 = scalar_select %p31, 0, %s30
      %s33 = ssub.s32 %s20, %s32
      %s34 = ssub.s32 %s21, %s28
      %s35 = sor.u32 %s33, %s34
      %p36 = scmp.eq.s32.totalorder %s35, 0
      %s38 = sadd.s32 %s37, 1
      %s39 = scalar_select %p36, %s37, %s38
      %p42 = pneg %p36
      %p43 = scmp.eq.s32.totalorder %s13, 3
      %p44 = por %p42, %p43
      %p45 = scmp.ne.s32.totalorder %s37, %s40
      %p46 = scmp.eq.s32.totalorder %s13, 0
      %p47 = por %p45, %p46
      %p48 = scmp.ne.s32.totalorder %s37, %s40
      %p49 = scmp.eq.s32.totalorder %s18, 3
      %p50 = por %p48, %p49
      %p51 = scmp.ne.s32.totalorder %s40, %s41
      %p52 = scmp.eq.s32.totalorder %s18, 0
      %p53 = por %p51, %p52
      %p54 = scmp.ne.s32.totalorder %s40, %s41
      %p55 = scmp.eq.s32.totalorder %s19, 3
      %p56 = por %p54, %p55
      %p58 = scmp.ne.s32.totalorder %s41, %s57
      %p59 = scmp.eq.s32.totalorder %s19, 0
      %p60 = por %p58, %p59
      %s61 = ssub.s32 %s20, %s32
      %s62 = ssub.s32 %s21, %s28
      %s63 = sor.u32 %s61, %s62
      %p64 = scmp.eq.s32.totalorder %s63, 0
      %s66 = sadd.s32 %s65, 1
      %s67 = scalar_select %p64, %s65, %s66
      %p70 = pneg %p64
      %p71 = scmp.eq.s32.totalorder %s13, 3
      %p72 = por %p70, %p71
      %p73 = scmp.ne.s32.totalorder %s65, %s68
      %p74 = scmp.eq.s32.totalorder %s13, 0
      %p75 = por %p73, %p74
      %p76 = scmp.ne.s32.totalorder %s65, %s68
      %p77 = scmp.eq.s32.totalorder %s18, 3
      %p78 = por %p76, %p77
      %p79 = scmp.ne.s32.totalorder %s68, %s69
      %p80 = scmp.eq.s32.totalorder %s18, 0
      %p81 = por %p79, %p80
      %p82 = scmp.ne.s32.totalorder %s68, %s69
      %p83 = scmp.eq.s32.totalorder %s19, 3
      %p84 = por %p82, %p83
      %p86 = scmp.ne.s32.totalorder %s69, %s85
      %p87 = scmp.eq.s32.totalorder %s19, 0
      %p88 = por %p86, %p87
      %p89 = scmp.le.s32.totalorder 1, %s13
      %p90 = scmp.lt.s32.totalorder %s13, 5
      %p91 = pnand %p89, %p90
      %p92 = pneg %p91
      // Predicated region
      $region9: #{tpu_custom_call.1} parent=5 // pred_check
        _
      $region10: #{tpu_custom_call.1} parent=5 // pred_check_branch
        %94 = sbr.rel (%p91) target = $region12
      $region11: #{tpu_custom_call.1} parent=5 // pred_region
        %s95 = ssub.s32 %s13, 1
      $region12: #{tpu_custom_call.1} parent=5 // pred_fallthru
        _
      %p96 = scmp.lt.s32.totalorder %s13, 4
      // Predicated region
      $region13: #{tpu_custom_call.1} parent=5 // pred_check
        %p97 = pneg %p96
      $region14: #{tpu_custom_call.1} parent=5 // pred_check_branch
        %99 = sbr.rel (%p97) target = $region16
      $region15: #{tpu_custom_call.1} parent=5 // pred_region
        // Predicated region
        $region17: #{tpu_custom_call.1} parent=15 // pred_check
          %p100 = pneg %p47
        $region18: #{tpu_custom_call.1} parent=15 // pred_check_branch
          %102 = sbr.rel (%p100) target = $region20
        $region19: #{tpu_custom_call.1} parent=15 // pred_region
          %s103 = sand.u32 %s37, 1
          %s104 = scalar_lea.sflag [#allocation3], %s103
          %s105 = sand.u32 %s37, 1
          %s106 = smul.addr %s105, 4
          %s107 = scalar_lea.vmem [#allocation2], %s106
          %s109 = ssub.s32 64, 64
          %110 = vsyncadd %s104, %s109
          %s111 = smul.addr %s20, 2
          %s112 = sadd.s32 %s21, %s111
          %s113 = smul.addr %s112, 64
          %s114 = scalar_lea.hbm %s0, %s113
          %s116 = sshll.u32 %s107, 4
          %s117 = int_to_ptr.vmem [resolvable:$true] %s116
          %119 = dma.hbm_to_vmem [thread:$0]  %s114, 64, %s117, %s104
        $region20: #{tpu_custom_call.1} parent=15 // pred_fallthru
          _
      $region16: #{tpu_custom_call.1} parent=5 // pred_fallthru
        _
      %p120 = scmp.le.s32.totalorder 1, %s13
      %p121 = scmp.lt.s32.totalorder %s13, 5
      %p122 = pnand %p120, %p121
      %p123 = pneg %p122
      // Predicated region
      $region21: #{tpu_custom_call.1} parent=5 // pred_check
        _
      $region22: #{tpu_custom_call.1} parent=5 // pred_check_branch
        %125 = sbr.rel (%p122) target = $region24
      $region23: #{tpu_custom_call.1} parent=5 // pred_region
        %s126 = ssub.s32 %s13, 1
        %s127 = sand.u32 %s40, 1
        %s128 = scalar_lea.sflag [#allocation3], %s127
        %s129 = sand.u32 %s40, 1
        %s130 = smul.addr %s129, 4
        %s131 = scalar_lea.vmem [#allocation2], %s130
        // Predicated region
        $region25: #{tpu_custom_call.1} parent=23 // pred_check
          %p132 = pneg %p53
        $region26: #{tpu_custom_call.1} parent=23 // pred_check_branch
          %134 = sbr.rel (%p132) target = $region28
        $region27: #{tpu_custom_call.1} parent=23 // pred_region
          %135 = dma.done %s128, 64
        $region28: #{tpu_custom_call.1} parent=23 // pred_fallthru
          _
        %s136 = sand.u32 %s40, 1
        %s137 = scalar_lea.sflag [#allocation3], %s136
        %s138 = sand.u32 %s40, 1
        %s139 = smul.addr %s138, 4
        %s140 = scalar_lea.vmem [#allocation2], %s139
        %p141 = pneg %p53
        %p142 = pneg %p50
        %p143 = pneg %p81
        %p144 = pneg %p78
        %s145 = sand.u32 %s68, 1
        %s146 = scalar_lea.sflag [#allocation4], %s145
        %s147 = sand.u32 %s68, 1
        %s148 = smul.addr %s147, 4
        %s149 = scalar_lea.vmem [#allocation5], %s148
        %v150 = vld [vmem:[%s131] sm:$0xf]
        %vm151 = vcmask 1043456
        %v152 = vsel %vm151, %v150, -inf
        %v153 = vrot.slane %v152, 4
        %v154 = vmax.f32 %v152, %v153
        %v155 = vrot.slane %v154, 2
        %v156 = vmax.f32 %v154, %v155
        %v157 = vrot.slane %v156, 1
        %v158 = vmax.f32 %v156, %v157
        %v159 = vsel %vm151, %v150, inf
        %v160 = vrot.slane %v159, 4
        %v161 = vmin.f32 %v159, %v160
        %v162 = vrot.slane %v161, 2
        %v163 = vmin.f32 %v161, %v162
        %v164 = vrot.slane %v163, 1
        %v165 = vmin.f32 %v163, %v164
        %v166 = vsub.f32 %v158, %v165
        %v167 = vrcp.pop 16.0
        %v168 = vmul.f32 %v166, %v167
        %v169 = vmul.f32 %v168, 2.0
        %v170 = vsub.f32 %v165, %v169
        %v171 = vmax.f32 %v168, 1e-08
        %v172 = vsub.f32 %v150, %v170
        %v173 = vrcp.pop %v171
        %v174 = vmul.f32 %v172, %v173
        %v175 = vfloor.f32 %v174
        %v176 = vmax.f32 %v175, 2.0
        %v177 = vmin.f32 %v176, 17.0
        %v178 = vmax.f32 %v175, 0.0
        %v179 = vmin.f32 %v178, 19.0
        %v180 = vsub.f32 %v174, %v177
        %v181 = vsub.f32 1.0, %v180
        %v182 = vmul.f32 %v180, %v180
        %v183 = vmul.f32 %v182, %v180
        %v184 = vmul.f32 %v181, %v181
        %v185 = vmul.f32 %v184, %v181
        %v186 = vmul.f32 %v185, 0.16666667
        %v187 = vmul.f32 %v183, 0.5
        %v188 = vsub.f32 %v187, %v182
        %v189 = vadd.f32 %v188, 0.6666667
        %v190 = vmul.f32 %v185, 0.5
        %v191 = vsub.f32 %v190, %v184
        %v192 = vadd.f32 %v191, 0.6666667
        %v193 = vmul.f32 %v183, 0.16666667
        %v194 = vadd.f32 %v186, %v189
        %v195 = vadd.f32 %v194, %v192
        %v196 = vadd.f32 %v195, %v193
        %v197 = vsel %vm151, %v196, 0.0
        %v198 = vrot.slane %v197, 4
        %v199 = vadd.f32 %v197, %v198
        %v200 = vrot.slane %v199, 2
        %v201 = vadd.f32 %v199, %v200
        %v202 = vrot.slane %v201, 1
        %v203 = vadd.f32 %v201, %v202
        %v204 = vmax.f32 %v203, 1e-08
        %v205 = vrcp.pop %v204
        %v206 = vmul.f32 1.0, %v205
        %vm207 = vcmp.eq.f32.partialorder %v177, 2.0
        %vm208 = vcmp.eq.f32.partialorder %v177, 3.0
        %vm209 = vcmp.eq.f32.partialorder %v177, 4.0
        %vm210 = vcmp.eq.f32.partialorder %v177, 5.0
        %vm211 = vcmp.eq.f32.partialorder %v177, 6.0
        %vm212 = vcmp.eq.f32.partialorder %v177, 7.0
        %vm213 = vcmp.eq.f32.partialorder %v177, 8.0
        %vm214 = vcmp.eq.f32.partialorder %v177, 9.0
        %vm215 = vcmp.eq.f32.partialorder %v177, 10.0
        %vm216 = vcmp.eq.f32.partialorder %v177, 11.0
        %vm217 = vcmp.eq.f32.partialorder %v177, 12.0
        %vm218 = vcmp.eq.f32.partialorder %v177, 13.0
        %vm219 = vcmp.eq.f32.partialorder %v177, 14.0
        %vm220 = vcmp.eq.f32.partialorder %v177, 15.0
        %vm221 = vcmp.eq.f32.partialorder %v177, 16.0
        %vm222 = vcmp.eq.f32.partialorder %v177, 17.0
        %v223 = vsel %vm207, %v186, 0.0
        %v224 = vsel %vm151, %v223, 0.0
        %v225 = vrot.slane %v224, 4
        %v226 = vadd.f32 %v224, %v225
        %v227 = vrot.slane %v226, 2
        %v228 = vadd.f32 %v226, %v227
        %v229 = vrot.slane %v228, 1
        %v230 = vadd.f32 %v228, %v229
        %vm231 = vcmp.eq.f32.partialorder %v179, 1.0
        %v232 = vsel %vm231, %v230, 0.0
        %v233 = vadd.f32 %v232, 0.0
        %v234 = vsel %vm208, %v186, 0.0
        %v235 = vsel %vm207, %v189, 0.0
        %v236 = vadd.f32 %v234, %v235
        %v237 = vsel %vm151, %v236, 0.0
        %v238 = vrot.slane %v237, 4
        %v239 = vadd.f32 %v237, %v238
        %v240 = vrot.slane %v239, 2
        %v241 = vadd.f32 %v239, %v240
        %v242 = vrot.slane %v241, 1
        %v243 = vadd.f32 %v241, %v242
        %vm244 = vcmp.eq.f32.partialorder %v179, 2.0
        %v245 = vsel %vm244, %v243, 0.0
        %v246 = vadd.f32 %v233, %v245
        %v247 = vsel %vm209, %v186, 0.0
        %v248 = vsel %vm208, %v189, 0.0
        %v249 = vadd.f32 %v247, %v248
        %v250 = vsel %vm207, %v192, 0.0
        %v251 = vadd.f32 %v249, %v250
        %v252 = vsel %vm151, %v251, 0.0
        %v253 = vrot.slane %v252, 4
        %v254 = vadd.f32 %v252, %v253
        %v255 = vrot.slane %v254, 2
        %v256 = vadd.f32 %v254, %v255
        %v257 = vrot.slane %v256, 1
        %v258 = vadd.f32 %v256, %v257
        %vm259 = vcmp.eq.f32.partialorder %v179, 3.0
        %v260 = vsel %vm259, %v258, 0.0
        %v261 = vadd.f32 %v246, %v260
        %v262 = vsel %vm210, %v186, 0.0
        %v263 = vsel %vm209, %v189, 0.0
        %v264 = vadd.f32 %v262, %v263
        %v265 = vsel %vm208, %v192, 0.0
        %v266 = vadd.f32 %v264, %v265
        %v267 = vsel %vm207, %v193, 0.0
        %v268 = vadd.f32 %v266, %v267
        %v269 = vsel %vm151, %v268, 0.0
        %v270 = vrot.slane %v269, 4
        %v271 = vadd.f32 %v269, %v270
        %v272 = vrot.slane %v271, 2
        %v273 = vadd.f32 %v271, %v272
        %v274 = vrot.slane %v273, 1
        %v275 = vadd.f32 %v273, %v274
        %vm276 = vcmp.eq.f32.partialorder %v179, 4.0
        %v277 = vsel %vm276, %v275, 0.0
        %v278 = vadd.f32 %v261, %v277
        %v279 = vsel %vm211, %v186, 0.0
        %v280 = vsel %vm210, %v189, 0.0
        %v281 = vadd.f32 %v279, %v280
        %v282 = vsel %vm209, %v192, 0.0
        %v283 = vadd.f32 %v281, %v282
        %v284 = vsel %vm208, %v193, 0.0
        %v285 = vadd.f32 %v283, %v284
        %v286 = vsel %vm151, %v285, 0.0
        %v287 = vrot.slane %v286, 4
        %v288 = vadd.f32 %v286, %v287
        %v289 = vrot.slane %v288, 2
        %v290 = vadd.f32 %v288, %v289
        %v291 = vrot.slane %v290, 1
        %v292 = vadd.f32 %v290, %v291
        %vm293 = vcmp.eq.f32.partialorder %v179, 5.0
        %v294 = vsel %vm293, %v292, 0.0
        %v295 = vadd.f32 %v278, %v294
        %v296 = vsel %vm212, %v186, 0.0
        %v297 = vsel %vm211, %v189, 0.0
        %v298 = vadd.f32 %v296, %v297
        %v299 = vsel %vm210, %v192, 0.0
        %v300 = vadd.f32 %v298, %v299
        %v301 = vsel %vm209, %v193, 0.0
        %v302 = vadd.f32 %v300, %v301
        %v303 = vsel %vm151, %v302, 0.0
        %v304 = vrot.slane %v303, 4
        %v305 = vadd.f32 %v303, %v304
        %v306 = vrot.slane %v305, 2
        %v307 = vadd.f32 %v305, %v306
        %v308 = vrot.slane %v307, 1
        %v309 = vadd.f32 %v307, %v308
        %vm310 = vcmp.eq.f32.partialorder %v179, 6.0
        %v311 = vsel %vm310, %v309, 0.0
        %v312 = vadd.f32 %v295, %v311
        %v313 = vsel %vm213, %v186, 0.0
        %v314 = vsel %vm212, %v189, 0.0
        %v315 = vadd.f32 %v313, %v314
        %v316 = vsel %vm211, %v192, 0.0
        %v317 = vadd.f32 %v315, %v316
        %v318 = vsel %vm210, %v193, 0.0
        %v319 = vadd.f32 %v317, %v318
        %v320 = vsel %vm151, %v319, 0.0
        %v321 = vrot.slane %v320, 4
        %v322 = vadd.f32 %v320, %v321
        %v323 = vrot.slane %v322, 2
        %v324 = vadd.f32 %v322, %v323
        %v325 = vrot.slane %v324, 1
        %v326 = vadd.f32 %v324, %v325
        %vm327 = vcmp.eq.f32.partialorder %v179, 7.0
        %v328 = vsel %vm327, %v326, 0.0
        %v329 = vadd.f32 %v312, %v328
        %v330 = vsel %vm214, %v186, 0.0
        %v331 = vsel %vm213, %v189, 0.0
        %v332 = vadd.f32 %v330, %v331
        %v333 = vsel %vm212, %v192, 0.0
        %v334 = vadd.f32 %v332, %v333
        %v335 = vsel %vm211, %v193, 0.0
        %v336 = vadd.f32 %v334, %v335
        %v337 = vsel %vm151, %v336, 0.0
        %v338 = vrot.slane %v337, 4
        %v339 = vadd.f32 %v337, %v338
        %v340 = vrot.slane %v339, 2
        %v341 = vadd.f32 %v339, %v340
        %v342 = vrot.slane %v341, 1
        %v343 = vadd.f32 %v341, %v342
        %vm344 = vcmp.eq.f32.partialorder %v179, 8.0
        %v345 = vsel %vm344, %v343, 0.0
        %v346 = vadd.f32 %v329, %v345
        %v347 = vsel %vm215, %v186, 0.0
        %v348 = vsel %vm214, %v189, 0.0
        %v349 = vadd.f32 %v347, %v348
        %v350 = vsel %vm213, %v192, 0.0
        %v351 = vadd.f32 %v349, %v350
        %v352 = vsel %vm212, %v193, 0.0
        %v353 = vadd.f32 %v351, %v352
        %v354 = vsel %vm151, %v353, 0.0
        %v355 = vrot.slane %v354, 4
        %v356 = vadd.f32 %v354, %v355
        %v357 = vrot.slane %v356, 2
        %v358 = vadd.f32 %v356, %v357
        %v359 = vrot.slane %v358, 1
        %v360 = vadd.f32 %v358, %v359
        %vm361 = vcmp.eq.f32.partialorder %v179, 9.0
        %v362 = vsel %vm361, %v360, 0.0
        %v363 = vadd.f32 %v346, %v362
        %v364 = vsel %vm216, %v186, 0.0
        %v365 = vsel %vm215, %v189, 0.0
        %v366 = vadd.f32 %v364, %v365
        %v367 = vsel %vm214, %v192, 0.0
        %v368 = vadd.f32 %v366, %v367
        %v369 = vsel %vm213, %v193, 0.0
        %v370 = vadd.f32 %v368, %v369
        %v371 = vsel %vm151, %v370, 0.0
        %v372 = vrot.slane %v371, 4
        %v373 = vadd.f32 %v371, %v372
        %v374 = vrot.slane %v373, 2
        %v375 = vadd.f32 %v373, %v374
        %v376 = vrot.slane %v375, 1
        %v377 = vadd.f32 %v375, %v376
        %vm378 = vcmp.eq.f32.partialorder %v179, 10.0
        %v379 = vsel %vm378, %v377, 0.0
        %v380 = vadd.f32 %v363, %v379
        %v381 = vsel %vm217, %v186, 0.0
        %v382 = vsel %vm216, %v189, 0.0
        %v383 = vadd.f32 %v381, %v382
        %v384 = vsel %vm215, %v192, 0.0
        %v385 = vadd.f32 %v383, %v384
        %v386 = vsel %vm214, %v193, 0.0
        %v387 = vadd.f32 %v385, %v386
        %v388 = vsel %vm151, %v387, 0.0
        %v389 = vrot.slane %v388, 4
        %v390 = vadd.f32 %v388, %v389
        %v391 = vrot.slane %v390, 2
        %v392 = vadd.f32 %v390, %v391
        %v393 = vrot.slane %v392, 1
        %v394 = vadd.f32 %v392, %v393
        %vm395 = vcmp.eq.f32.partialorder %v179, 11.0
        %v396 = vsel %vm395, %v394, 0.0
        %v397 = vadd.f32 %v380, %v396
        %v398 = vsel %vm218, %v186, 0.0
        %v399 = vsel %vm217, %v189, 0.0
        %v400 = vadd.f32 %v398, %v399
        %v401 = vsel %vm216, %v192, 0.0
        %v402 = vadd.f32 %v400, %v401
        %v403 = vsel %vm215, %v193, 0.0
        %v404 = vadd.f32 %v402, %v403
        %v405 = vsel %vm151, %v404, 0.0
        %v406 = vrot.slane %v405, 4
        %v407 = vadd.f32 %v405, %v406
        %v408 = vrot.slane %v407, 2
        %v409 = vadd.f32 %v407, %v408
        %v410 = vrot.slane %v409, 1
        %v411 = vadd.f32 %v409, %v410
        %vm412 = vcmp.eq.f32.partialorder %v179, 12.0
        %v413 = vsel %vm412, %v411, 0.0
        %v414 = vadd.f32 %v397, %v413
        %v415 = vsel %vm219, %v186, 0.0
        %v416 = vsel %vm218, %v189, 0.0
        %v417 = vadd.f32 %v415, %v416
        %v418 = vsel %vm217, %v192, 0.0
        %v419 = vadd.f32 %v417, %v418
        %v420 = vsel %vm216, %v193, 0.0
        %v421 = vadd.f32 %v419, %v420
        %v422 = vsel %vm151, %v421, 0.0
        %v423 = vrot.slane %v422, 4
        %v424 = vadd.f32 %v422, %v423
        %v425 = vrot.slane %v424, 2
        %v426 = vadd.f32 %v424, %v425
        %v427 = vrot.slane %v426, 1
        %v428 = vadd.f32 %v426, %v427
        %vm429 = vcmp.eq.f32.partialorder %v179, 13.0
        %v430 = vsel %vm429, %v428, 0.0
        %v431 = vadd.f32 %v414, %v430
        %v432 = vsel %vm220, %v186, 0.0
        %v433 = vsel %vm219, %v189, 0.0
        %v434 = vadd.f32 %v432, %v433
        %v435 = vsel %vm218, %v192, 0.0
        %v436 = vadd.f32 %v434, %v435
        %v437 = vsel %vm217, %v193, 0.0
        %v438 = vadd.f32 %v436, %v437
        %v439 = vsel %vm151, %v438, 0.0
        %v440 = vrot.slane %v439, 4
        %v441 = vadd.f32 %v439, %v440
        %v442 = vrot.slane %v441, 2
        %v443 = vadd.f32 %v441, %v442
        %v444 = vrot.slane %v443, 1
        %v445 = vadd.f32 %v443, %v444
        %vm446 = vcmp.eq.f32.partialorder %v179, 14.0
        %v447 = vsel %vm446, %v445, 0.0
        %v448 = vadd.f32 %v431, %v447
        %v449 = vsel %vm221, %v186, 0.0
        %v450 = vsel %vm220, %v189, 0.0
        %v451 = vadd.f32 %v449, %v450
        %v452 = vsel %vm219, %v192, 0.0
        %v453 = vadd.f32 %v451, %v452
        %v454 = vsel %vm218, %v193, 0.0
        %v455 = vadd.f32 %v453, %v454
        %v456 = vsel %vm151, %v455, 0.0
        %v457 = vrot.slane %v456, 4
        %v458 = vadd.f32 %v456, %v457
        %v459 = vrot.slane %v458, 2
        %v460 = vadd.f32 %v458, %v459
        %v461 = vrot.slane %v460, 1
        %v462 = vadd.f32 %v460, %v461
        %vm463 = vcmp.eq.f32.partialorder %v179, 15.0
        %v464 = vsel %vm463, %v462, 0.0
        %v465 = vadd.f32 %v448, %v464
        %v466 = vsel %vm222, %v186, 0.0
        %v467 = vsel %vm221, %v189, 0.0
        %v468 = vadd.f32 %v466, %v467
        %v469 = vsel %vm220, %v192, 0.0
        %v470 = vadd.f32 %v468, %v469
        %v471 = vsel %vm219, %v193, 0.0
        %v472 = vadd.f32 %v470, %v471
        %v473 = vsel %vm151, %v472, 0.0
        %v474 = vrot.slane %v473, 4
        %v475 = vadd.f32 %v473, %v474
        %v476 = vrot.slane %v475, 2
        %v477 = vadd.f32 %v475, %v476
        %v478 = vrot.slane %v477, 1
        %v479 = vadd.f32 %v477, %v478
        %vm480 = vcmp.eq.f32.partialorder %v179, 16.0
        %v481 = vsel %vm480, %v479, 0.0
        %v482 = vadd.f32 %v465, %v481
        %v483 = vsel %vm222, %v189, 0.0
        %v484 = vsel %vm221, %v192, 0.0
        %v485 = vadd.f32 %v483, %v484
        %v486 = vsel %vm220, %v193, 0.0
        %v487 = vadd.f32 %v485, %v486
        %v488 = vsel %vm151, %v487, 0.0
        %v489 = vrot.slane %v488, 4
        %v490 = vadd.f32 %v488, %v489
        %v491 = vrot.slane %v490, 2
        %v492 = vadd.f32 %v490, %v491
        %v493 = vrot.slane %v492, 1
        %v494 = vadd.f32 %v492, %v493
        %vm495 = vcmp.eq.f32.partialorder %v179, 17.0
        %v496 = vsel %vm495, %v494, 0.0
        %v497 = vadd.f32 %v482, %v496
        %v498 = vsel %vm222, %v192, 0.0
        %v499 = vsel %vm221, %v193, 0.0
        %v500 = vadd.f32 %v498, %v499
        %v501 = vsel %vm151, %v500, 0.0
        %v502 = vrot.slane %v501, 4
        %v503 = vadd.f32 %v501, %v502
        %v504 = vrot.slane %v503, 2
        %v505 = vadd.f32 %v503, %v504
        %v506 = vrot.slane %v505, 1
        %v507 = vadd.f32 %v505, %v506
        %vm508 = vcmp.eq.f32.partialorder %v179, 18.0
        %v509 = vsel %vm508, %v507, 0.0
        %v510 = vadd.f32 %v497, %v509
        %v511 = vmul.f32 %v510, %v206
        %512 = vst [vmem:[%s149] sm:$0xf] %v511
        %s513 = sand.u32 %s68, 1
        %s514 = scalar_lea.sflag [#allocation4], %s513
        %s515 = sand.u32 %s68, 1
        %s516 = smul.addr %s515, 4
        %s517 = scalar_lea.vmem [#allocation5], %s516
        // Predicated region
        $region29: #{tpu_custom_call.1} parent=23 // pred_check
          %p518 = pneg %p78
        $region30: #{tpu_custom_call.1} parent=23 // pred_check_branch
          %520 = sbr.rel (%p518) target = $region32
        $region31: #{tpu_custom_call.1} parent=23 // pred_region
          %s522 = ssub.s32 64, 64
          %523 = vsyncadd %s514, %s522
          %s524 = smul.addr %s22, 2
          %s525 = sadd.s32 %s23, %s524
          %s526 = smul.addr %s525, 64
          %s527 = scalar_lea.hbm %s1, %s526
          %s529 = sshll.u32 %s517, 4
          %s530 = int_to_ptr.vmem [resolvable:$true] %s529
          %532 = dma.vmem_to_hbm [thread:$0]  %s530, 64, %s527, %s514
        $region32: #{tpu_custom_call.1} parent=23 // pred_fallthru
          _
      $region24: #{tpu_custom_call.1} parent=5 // pred_fallthru
        _
      %p533 = scmp.le.s32.totalorder 2, %s13
      // Predicated region
      $region33: #{tpu_custom_call.1} parent=5 // pred_check
        %p534 = pneg %p533
      $region34: #{tpu_custom_call.1} parent=5 // pred_check_branch
        %536 = sbr.rel (%p534) target = $region36
      $region35: #{tpu_custom_call.1} parent=5 // pred_region
        %s537 = ssub.s32 %s13, 2
        // Predicated region
        $region37: #{tpu_custom_call.1} parent=35 // pred_check
          %p538 = pneg %p84
        $region38: #{tpu_custom_call.1} parent=35 // pred_check_branch
          %540 = sbr.rel (%p538) target = $region40
        $region39: #{tpu_custom_call.1} parent=35 // pred_region
          %s541 = sand.u32 %s69, 1
          %s542 = scalar_lea.sflag [#allocation4], %s541
          %s543 = sand.u32 %s69, 1
          %s544 = smul.addr %s543, 4
          %s545 = scalar_lea.vmem [#allocation5], %s544
          %546 = dma.done %s542, 64
        $region40: #{tpu_custom_call.1} parent=35 // pred_fallthru
          _
      $region36: #{tpu_custom_call.1} parent=5 // pred_fallthru
        _
    $region6: #{tpu_custom_call.1} parent=1 // loop_footer
      %s17 = sadd.s32 1, %s13
    $region7: #{tpu_custom_call.1} parent=1 // loop_footer_branch
      %12 = sbr.rel target = $region3
    $region8: #{tpu_custom_call.1} parent=1 // loop_exit
      _
    %547 = vsyncpa [#allocation3], 1
    %s548 = scalar_lea.sflag [#allocation3], 1
    %549 = vsyncpa %s548, 1
    %550 = vsyncpa [#allocation4], 1
    %s551 = scalar_lea.sflag [#allocation4], 1
    %552 = vsyncpa %s551, 1

</llo_original>
